<compile_context>
chip_gen: v5e
topology: v5e:2x2
jax: 0.10.0
libtpu: 0.0.40
codegen_flags: <defaults>
</compile_context>

<pallas_src>
import functools

import jax
import jax.numpy as jnp
from jax.experimental import pallas as pl
from jax.experimental.pallas import tpu as pltpu

NUM_INPUTS = 784   # = 1 * 28 * 28
NUM_OUTPUTS = 10
LANE = 128         # lane-pad the weight/bias output dimension to this for the MXU


def _round_up(x, m):
    return ((x + m - 1) // m) * m


def linear_kernel(x_ref, w_ref, b_ref, o_ref):
    # x_ref: (tile_b, F), w_ref: (F, O_pad), b_ref: (1, O_pad), o_ref: (tile_b, O)
    acc = jnp.dot(x_ref[...], w_ref[...], preferred_element_type=jnp.float32)
    out = acc + b_ref[...]                       # (tile_b, O_pad)
    o_ref[...] = out[:, : o_ref.shape[1]].astype(o_ref.dtype)


def pad_params(weight, bias):
    """Lane-pad weight (F, O) -> (F, O_pad) and bias (O,) -> (1, O_pad).

    Called ONCE at parameter setup so the per-call jitted forward never re-pads.
    """
    F, O = weight.shape
    O_pad = _round_up(O, LANE)
    w_pad = jnp.pad(weight, ((0, 0), (0, O_pad - O)))
    b_pad = jnp.pad(bias, (0, O_pad - O)).reshape(1, O_pad)
    return w_pad, b_pad


@functools.partial(jax.jit, static_argnames=("out_features", "tile_b"))
def linear_net_forward(x, w_pad, b_pad, *, out_features=NUM_OUTPUTS, tile_b=2048):
    """x: (B, C, H, W) float32; w_pad: (F, O_pad); b_pad: (1, O_pad). Returns (B, O)."""
    B = x.shape[0]
    x_flat = x.reshape(B, -1)                    # glue: view(x.shape[0], -1)
    F = x_flat.shape[1]
    O = out_features
    O_pad = w_pad.shape[1]

    # Batch tile: multiple of 8 (sublane), no larger than needed for small batches.
    # No batch padding of x -- the last grid step is a partial boundary block.
    tile_b = max(8, min(_round_up(tile_b, 8), _round_up(B, 8)))
    num_tiles = pl.cdiv(B, tile_b)

    cost = pl.CostEstimate(
        flops=2 * num_tiles * tile_b * F * O_pad,
        transcendentals=0,
        bytes_accessed=(B * F + F * O_pad + O_pad + B * O) * 4,
    )

    out = pl.pallas_call(
        linear_kernel,
        out_shape=jax.ShapeDtypeStruct((B, O), x.dtype),
        grid_spec=pltpu.PrefetchScalarGridSpec(
            num_scalar_prefetch=0,
            grid=(num_tiles,),
            in_specs=[
                # x: tiled over batch -> double-buffered HBM->VMEM pipeline.
                pl.BlockSpec((tile_b, F), lambda i: (i, 0)),
                # weight / bias: same block every step -> stay VMEM-resident.
                pl.BlockSpec((F, O_pad), lambda i: (0, 0)),
                pl.BlockSpec((1, O_pad), lambda i: (0, 0)),
            ],
            # Unpadded output: full (small) last dim -> legal block, 40 B/row writeback.
            out_specs=pl.BlockSpec((tile_b, O), lambda i: (i, 0)),
        ),
        compiler_params=pltpu.CompilerParams(
            # batch tiles are independent -> shard across v7x's 2 TensorCores.
            dimension_semantics=("parallel",),
            # Clear v5e's 16 MiB / v6e-v7x's 32 MiB default scoped-VMEM limits for
            # tile_b=2048 (~17 MiB working set); stays under v7x's 64 MiB physical.
            vmem_limit_bytes=48 << 20,
        ),
        cost_estimate=cost,
    )(x_flat, w_pad, b_pad)

    return out


def init_params(key, num_inputs, num_outputs):
    """Deterministic init mimicking nn.Linear defaults (uniform +-1/sqrt(fan_in))."""
    kw, kb = jax.random.split(key)
    bound = 1.0 / jnp.sqrt(num_inputs)
    # PyTorch stores weight as (out, in); we keep (in, out) so the kernel does x @ W.
    weight = jax.random.uniform(
        kw, (num_inputs, num_outputs), minval=-bound, maxval=bound, dtype=jnp.float32
    )
    bias = jax.random.uniform(
        kb, (num_outputs,), minval=-bound, maxval=bound, dtype=jnp.float32
    )
    return weight, bias


if __name__ == "__main__":
    key = jax.random.PRNGKey(0)
    k_x, k_p = jax.random.split(key)

    # Small MNIST-like input consistent with num_inputs=784: (B=2, C=1, H=28, W=28)
    x = jax.random.normal(k_x, (2, 1, 28, 28), dtype=jnp.float32)
    weight, bias = init_params(k_p, NUM_INPUTS, NUM_OUTPUTS)
    # Hoisted one-time parameter padding (not in the jitted per-call path).
    w_pad, b_pad = pad_params(weight, bias)
    w_pad, b_pad = jax.block_until_ready((w_pad, b_pad))

    y = linear_net_forward(x, w_pad, b_pad, out_features=NUM_OUTPUTS)
    y = jax.block_until_ready(y)

    # Reference check in plain JAX
    y_ref = x.reshape(x.shape[0], -1) @ weight + bias
    assert y.shape == (2, NUM_OUTPUTS)
    assert jnp.allclose(y, y_ref, atol=1e-5, rtol=1e-5)

    # Also exercise a batch that is not a multiple of the tile to check the
    # partial-boundary-block path (no wrapper-side batch padding anymore).
    x_big = jax.random.normal(k_x, (37, 1, 28, 28), dtype=jnp.float32)
    y_big = jax.block_until_ready(
        linear_net_forward(x_big, w_pad, b_pad, out_features=NUM_OUTPUTS, tile_b=16)
    )
    y_big_ref = x_big.reshape(37, -1) @ weight + bias
    assert y_big.shape == (37, NUM_OUTPUTS)
    assert jnp.allclose(y_big, y_big_ref, atol=1e-5, rtol=1e-5)

    print("KERNEL_OK")
</pallas_src>

<mosaic_0001>
module attributes {stable_mosaic.version = 11 : i64} {
  func.func @linear_kernel(%arg0: i32, %arg1: memref<8x784xf32, #tpu.memory_space<vmem>>, %arg2: memref<784x128xf32, #tpu.memory_space<vmem>>, %arg3: memref<1x128xf32, #tpu.memory_space<vmem>>, %arg4: memref<8x10xf32, #tpu.memory_space<vmem>>) attributes {dimension_semantics = [#tpu.dimension_semantics<parallel>], iteration_bounds = array<i64: 1>, scalar_prefetch = 0 : i64, scratch_operands = 0 : i64, tpu.core_type = #tpu.core_type<tc>, window_params = [{transform_indices = @transform_0, window_bounds = array<i64: 8, 784>}, {pipeline_mode = #tpu.pipeline_mode<synchronous>, transform_indices = @transform_1, window_bounds = array<i64: 784, 128>}, {pipeline_mode = #tpu.pipeline_mode<synchronous>, transform_indices = @transform_2, window_bounds = array<i64: 1, 128>}, {transform_indices = @transform_3, window_bounds = array<i64: 8, 10>}]} {
    %c0 = arith.constant 0 : index
    %c0_0 = arith.constant 0 : index
    %0 = vector.load %arg1[%c0, %c0_0] : memref<8x784xf32, #tpu.memory_space<vmem>>, vector<8x784xf32>
    %c0_1 = arith.constant 0 : index
    %c0_2 = arith.constant 0 : index
    %1 = vector.load %arg2[%c0_1, %c0_2] : memref<784x128xf32, #tpu.memory_space<vmem>>, vector<784x128xf32>
    %cst = arith.constant dense<0.000000e+00> : vector<8x128xf32>
    %2 = tpu.matmul %0, %1, %cst {dimension_numbers = #tpu.dot_dimension_numbers<[1], [0], [0], [1], [0, 0, 1, 1], [], []>} : vector<8x784xf32>, vector<784x128xf32>, vector<8x128xf32> -> vector<8x128xf32>
    %c0_3 = arith.constant 0 : index
    %c0_4 = arith.constant 0 : index
    %3 = vector.load %arg3[%c0_3, %c0_4] : memref<1x128xf32, #tpu.memory_space<vmem>>, vector<1x128xf32>
    %4 = vector.broadcast %3 : vector<1x128xf32> to vector<8x128xf32>
    %5 = arith.addf %2, %4 : vector<8x128xf32>
    %6 = vector.extract_strided_slice %5 {offsets = [0, 0], sizes = [8, 10], strides = [1, 1]} : vector<8x128xf32> to vector<8x10xf32>
    %c0_5 = arith.constant 0 : index
    %c0_6 = arith.constant 0 : index
    %7 = vector.load %arg4[%c0_5, %c0_6] : memref<8x10xf32, #tpu.memory_space<vmem>>, vector<8x10xf32>
    tpu.vector_store %arg4[%c0_5, %c0_6], %6 {strides = array<i32>} : memref<8x10xf32, #tpu.memory_space<vmem>>, vector<8x10xf32>,
    return
  }
  func.func @transform_0(%arg0: i32) -> (i32, i32) {
    %c0_i32 = arith.constant 0 : i32
    %c0_i32_0 = arith.constant 0 : i32
    return %arg0, %c0_i32 : i32, i32
  }
  func.func @transform_1(%arg0: i32) -> (i32, i32) {
    %c0_i32 = arith.constant 0 : i32
    %c0_i32_0 = arith.constant 0 : i32
    %c0_i32_1 = arith.constant 0 : i32
    return %c0_i32, %c0_i32_0 : i32, i32
  }
  func.func @transform_2(%arg0: i32) -> (i32, i32) {
    %c0_i32 = arith.constant 0 : i32
    %c0_i32_0 = arith.constant 0 : i32
    %c0_i32_1 = arith.constant 0 : i32
    return %c0_i32, %c0_i32_0 : i32, i32
  }
  func.func @transform_3(%arg0: i32) -> (i32, i32) {
    %c0_i32 = arith.constant 0 : i32
    %c0_i32_0 = arith.constant 0 : i32
    return %arg0, %c0_i32 : i32, i32
  }
}

</mosaic_0001>

<llo_original>
// kernel: linear_net_forward.1
$region0: #{linear_net_forward.1}
  #allocation0 [shape = 'u32[]', space=smem, size = 0x4, offset = 0x4, fixed_abs, tag = 'smem constant byte address 0x4 - core index']
  #allocation1 [shape = 'u32[72,128]{1,0:T(1,128)}', space=vmem, size = 0x9000, scoped, tag = 'internal scratch']
  %s0 = inlined_call_operand.vmem [shape: f32[2,784], index: 0, kind: input, shape index: {}]
  %s1 = inlined_call_operand.hbm [shape: f32[784,128], index: 1, kind: input, shape index: {}]
  %s2 = inlined_call_operand.vmem [shape: f32[1,128], index: 2, kind: input, shape index: {}]
  %s3 = inlined_call_operand.hbm [shape: f32[2,10], index: 3, kind: output, shape index: {}]
  %s4 = sld [smem:[#allocation0]]
  $region26: #{linear_net_forward.1} parent=0
    _
  %s6 = ssub.s32 1, %s4
  %s7 = scalar_select 0, %s6, %s4
  $region1: #{linear_net_forward.1} parent=0
    #allocation2 [shape = 'u8[401408]{0}', space=vmem, size = 0x62000, scoped, tag = 'input window, operand 1, single buffered']
    #allocation3 [shape = 's32[1]{0}', space=sflag, size = 0x4, scoped, tag = 'scoped memory for linear_net_forward.1']
    #allocation4 [shape = 's32[1]{0}', space=sflag, size = 0x4, scoped, tag = 'scoped memory for linear_net_forward.1']
    #allocation5 [shape = 'u8[4096]{0}', space=vmem, size = 0x1000, scoped, tag = 'output window, operand 0, single buffered']
    %8 = vsyncpa [#allocation3], 0
    %9 = vsyncpa [#allocation4], 0
    // Predicated region
    $region2: #{linear_net_forward.1} parent=1 // pred_check
      _
    $region3: #{linear_net_forward.1} parent=1 // pred_check_branch
      %11 = sbr.rel (0) target = $region5
    $region4: #{linear_net_forward.1} parent=1 // pred_region
      _
    $region5: #{linear_net_forward.1} parent=1 // pred_fallthru
      _
    // Predicated region
    $region6: #{linear_net_forward.1} parent=1 // pred_check
      _
    $region7: #{linear_net_forward.1} parent=1 // pred_check_branch
      %13 = sbr.rel (0) target = $region9
    $region8: #{linear_net_forward.1} parent=1 // pred_region
      %15 = vsyncadd [#allocation3], 0
      %s16 = sshll.u32 %s1, 4
      %s17 = int_to_ptr.hbm [resolvable:$true] %s16
      %s18 = sshll.u32 [#allocation2], 4
      %s19 = int_to_ptr.vmem [resolvable:$true] %s18
      %24 = dma.hbm_to_vmem [thread:$0]  %s17, 12544, %s19, [#allocation3], 128, 128, 8
    $region9: #{linear_net_forward.1} parent=1 // pred_fallthru
      _
    // Predicated region
    $region10: #{linear_net_forward.1} parent=1 // pred_check
      _
    $region11: #{linear_net_forward.1} parent=1 // pred_check_branch
      %26 = sbr.rel (0) target = $region13
    $region12: #{linear_net_forward.1} parent=1 // pred_region
      _
    $region13: #{linear_net_forward.1} parent=1 // pred_fallthru
      _
    // Predicated region
    $region14: #{linear_net_forward.1} parent=1 // pred_check
      _
    $region15: #{linear_net_forward.1} parent=1 // pred_check_branch
      %28 = sbr.rel (0) target = $region17
    $region16: #{linear_net_forward.1} parent=1 // pred_region
      %30 = dma.done [#allocation3], 12544
    $region17: #{linear_net_forward.1} parent=1 // pred_fallthru
      _
    %v31 = vld [vmem:[%s0] sm:$0xff]
    %v32 = vld [vmem:[%s0 + $0x8] sm:$0x3f]
    %v33 = vld [vmem:[%s0 + $0xe] sm:$0xff]
    %v34 = vld [vmem:[%s0 + $0x16] sm:$0x3f]
    %v35 = vld [vmem:[%s0 + $0x1c] sm:$0xff]
    %v36 = vld [vmem:[%s0 + $0x24] sm:$0x3f]
    %v37 = vld [vmem:[%s0 + $0x2a] sm:$0xff]
    %v38 = vld [vmem:[%s0 + $0x32] sm:$0x3f]
    %v39 = vld [vmem:[#allocation2] sm:$0xff]
    %v40 = vld [vmem:[#allocation2 + $0x8] sm:$0xff]
    %v41 = vld [vmem:[#allocation2 + $0x10] sm:$0xff]
    %v42 = vld [vmem:[#allocation2 + $0x18] sm:$0xff]
    %v43 = vld [vmem:[#allocation2 + $0x20] sm:$0xff]
    %v44 = vld [vmem:[#allocation2 + $0x28] sm:$0xff]
    %v45 = vld [vmem:[#allocation2 + $0x30] sm:$0xff]
    %v46 = vld [vmem:[#allocation2 + $0x38] sm:$0xff]
    %v47 = vld [vmem:[#allocation2 + $0x40] sm:$0xff]
    %v48 = vld [vmem:[#allocation2 + $0x48] sm:$0xff]
    %v49 = vld [vmem:[#allocation2 + $0x50] sm:$0xff]
    %v50 = vld [vmem:[#allocation2 + $0x58] sm:$0xff]
    %v51 = vld [vmem:[#allocation2 + $0x60] sm:$0xff]
    %v52 = vld [vmem:[#allocation2 + $0x68] sm:$0xff]
    %v53 = vld [vmem:[#allocation2 + $0x70] sm:$0xff]
    %v54 = vld [vmem:[#allocation2 + $0x78] sm:$0xff]
    %v55 = vld [vmem:[#allocation2 + $0x80] sm:$0xff]
    %v56 = vld [vmem:[#allocation2 + $0x88] sm:$0xff]
    %v57 = vld [vmem:[#allocation2 + $0x90] sm:$0xff]
    %v58 = vld [vmem:[#allocation2 + $0x98] sm:$0xff]
    %v59 = vld [vmem:[#allocation2 + $0xa0] sm:$0xff]
    %v60 = vld [vmem:[#allocation2 + $0xa8] sm:$0xff]
    %v61 = vld [vmem:[#allocation2 + $0xb0] sm:$0xff]
    %v62 = vld [vmem:[#allocation2 + $0xb8] sm:$0xff]
    %v63 = vld [vmem:[#allocation2 + $0xc0] sm:$0xff]
    %v64 = vld [vmem:[#allocation2 + $0xc8] sm:$0xff]
    %v65 = vld [vmem:[#allocation2 + $0xd0] sm:$0xff]
    %v66 = vld [vmem:[#allocation2 + $0xd8] sm:$0xff]
    %v67 = vld [vmem:[#allocation2 + $0xe0] sm:$0xff]
    %v68 = vld [vmem:[#allocation2 + $0xe8] sm:$0xff]
    %v69 = vld [vmem:[#allocation2 + $0xf0] sm:$0xff]
    %v70 = vld [vmem:[#allocation2 + $0xf8] sm:$0xff]
    %v71 = vld [vmem:[#allocation2 + $0x100] sm:$0xff]
    %v72 = vld [vmem:[#allocation2 + $0x108] sm:$0xff]
    %v73 = vld [vmem:[#allocation2 + $0x110] sm:$0xff]
    %v74 = vld [vmem:[#allocation2 + $0x118] sm:$0xff]
    %v75 = vld [vmem:[#allocation2 + $0x120] sm:$0xff]
    %v76 = vld [vmem:[#allocation2 + $0x128] sm:$0xff]
    %v77 = vld [vmem:[#allocation2 + $0x130] sm:$0xff]
    %v78 = vld [vmem:[#allocation2 + $0x138] sm:$0xff]
    %v79 = vld [vmem:[#allocation2 + $0x140] sm:$0xff]
    %v80 = vld [vmem:[#allocation2 + $0x148] sm:$0xff]
    %v81 = vld [vmem:[#allocation2 + $0x150] sm:$0xff]
    %v82 = vld [vmem:[#allocation2 + $0x158] sm:$0xff]
    %v83 = vld [vmem:[#allocation2 + $0x160] sm:$0xff]
    %v84 = vld [vmem:[#allocation2 + $0x168] sm:$0xff]
    %v85 = vld [vmem:[#allocation2 + $0x170] sm:$0xff]
    %v86 = vld [vmem:[#allocation2 + $0x178] sm:$0xff]
    %v87 = vld [vmem:[#allocation2 + $0x180] sm:$0xff]
    %v88 = vld [vmem:[#allocation2 + $0x188] sm:$0xff]
    %v89 = vld [vmem:[#allocation2 + $0x190] sm:$0xff]
    %v90 = vld [vmem:[#allocation2 + $0x198] sm:$0xff]
    %v91 = vld [vmem:[#allocation2 + $0x1a0] sm:$0xff]
    %v92 = vld [vmem:[#allocation2 + $0x1a8] sm:$0xff]
    %v93 = vld [vmem:[#allocation2 + $0x1b0] sm:$0xff]
    %v94 = vld [vmem:[#allocation2 + $0x1b8] sm:$0xff]
    %v95 = vld [vmem:[#allocation2 + $0x1c0] sm:$0xff]
    %v96 = vld [vmem:[#allocation2 + $0x1c8] sm:$0xff]
    %v97 = vld [vmem:[#allocation2 + $0x1d0] sm:$0xff]
    %v98 = vld [vmem:[#allocation2 + $0x1d8] sm:$0xff]
    %v99 = vld [vmem:[#allocation2 + $0x1e0] sm:$0xff]
    %v100 = vld [vmem:[#allocation2 + $0x1e8] sm:$0xff]
    %v101 = vld [vmem:[#allocation2 + $0x1f0] sm:$0xff]
    %v102 = vld [vmem:[#allocation2 + $0x1f8] sm:$0xff]
    %v103 = vld [vmem:[#allocation2 + $0x200] sm:$0xff]
    %v104 = vld [vmem:[#allocation2 + $0x208] sm:$0xff]
    %v105 = vld [vmem:[#allocation2 + $0x210] sm:$0xff]
    %v106 = vld [vmem:[#allocation2 + $0x218] sm:$0xff]
    %v107 = vld [vmem:[#allocation2 + $0x220] sm:$0xff]
    %v108 = vld [vmem:[#allocation2 + $0x228] sm:$0xff]
    %v109 = vld [vmem:[#allocation2 + $0x230] sm:$0xff]
    %v110 = vld [vmem:[#allocation2 + $0x238] sm:$0xff]
    %v111 = vld [vmem:[#allocation2 + $0x240] sm:$0xff]
    %v112 = vld [vmem:[#allocation2 + $0x248] sm:$0xff]
    %v113 = vld [vmem:[#allocation2 + $0x250] sm:$0xff]
    %v114 = vld [vmem:[#allocation2 + $0x258] sm:$0xff]
    %v115 = vld [vmem:[#allocation2 + $0x260] sm:$0xff]
    %v116 = vld [vmem:[#allocation2 + $0x268] sm:$0xff]
    %v117 = vld [vmem:[#allocation2 + $0x270] sm:$0xff]
    %v118 = vld [vmem:[#allocation2 + $0x278] sm:$0xff]
    %v119 = vld [vmem:[#allocation2 + $0x280] sm:$0xff]
    %v120 = vld [vmem:[#allocation2 + $0x288] sm:$0xff]
    %v121 = vld [vmem:[#allocation2 + $0x290] sm:$0xff]
    %v122 = vld [vmem:[#allocation2 + $0x298] sm:$0xff]
    %v123 = vld [vmem:[#allocation2 + $0x2a0] sm:$0xff]
    %v124 = vld [vmem:[#allocation2 + $0x2a8] sm:$0xff]
    %v125 = vld [vmem:[#allocation2 + $0x2b0] sm:$0xff]
    %v126 = vld [vmem:[#allocation2 + $0x2b8] sm:$0xff]
    %v127 = vld [vmem:[#allocation2 + $0x2c0] sm:$0xff]
    %v128 = vld [vmem:[#allocation2 + $0x2c8] sm:$0xff]
    %v129 = vld [vmem:[#allocation2 + $0x2d0] sm:$0xff]
    %v130 = vld [vmem:[#allocation2 + $0x2d8] sm:$0xff]
    %v131 = vld [vmem:[#allocation2 + $0x2e0] sm:$0xff]
    %v132 = vld [vmem:[#allocation2 + $0x2e8] sm:$0xff]
    %v133 = vld [vmem:[#allocation2 + $0x2f0] sm:$0xff]
    %v134 = vld [vmem:[#allocation2 + $0x2f8] sm:$0xff]
    %v135 = vld [vmem:[#allocation2 + $0x300] sm:$0xff]
    %v136 = vld [vmem:[#allocation2 + $0x308] sm:$0xff]
    %v137 = vld [vmem:[%s2] sm:$0x1]
    %v139 = vperm.slane %v137, 0
    %149 = vst [vmem:[#allocation1] ss:$4 sm:$0xff] %v31
    %s150 = scalar_lea.vmem [#allocation1], 1
    %151 = vst [vmem:[%s150] ss:$4 sm:$0xff] %v33
    %s152 = scalar_lea.vmem [#allocation1], 2
    %153 = vst [vmem:[%s152] ss:$4 sm:$0xff] %v35
    %s154 = scalar_lea.vmem [#allocation1], 3
    %155 = vst [vmem:[%s154] ss:$4 sm:$0xff] %v37
    %s156 = scalar_lea.vmem [#allocation1], 32
    %157 = vst [vmem:[%s156] ss:$4 sm:$0xff] %v32
    %s158 = scalar_lea.vmem [#allocation1], 33
    %159 = vst [vmem:[%s158] ss:$4 sm:$0xff] %v34
    %s160 = scalar_lea.vmem [#allocation1], 34
    %161 = vst [vmem:[%s160] ss:$4 sm:$0xff] %v36
    %s162 = scalar_lea.vmem [#allocation1], 35
    %163 = vst [vmem:[%s162] ss:$4 sm:$0xff] %v38
    %v164 = vld.sshfl [vmem:[#allocation1] sm:$0xff pattern:$0x73625140]
    %v165 = vld.sshfl [vmem:[#allocation1 + $0x8] sm:$0xff pattern:$0x73625140]
    %v166 = vld.sshfl [vmem:[#allocation1 + $0x10] sm:$0xff pattern:$0x73625140]
    %v167 = vld.sshfl [vmem:[#allocation1 + $0x18] sm:$0xff pattern:$0x73625140]
    %v168 = vld.sshfl [vmem:[#allocation1 + $0x20] sm:$0xff pattern:$0x73625140]
    %v169 = vld.sshfl [vmem:[#allocation1 + $0x28] sm:$0xff pattern:$0x73625140]
    %v170 = vld.sshfl [vmem:[#allocation1 + $0x30] sm:$0xff pattern:$0x73625140]
    %vm177 = vcmask 130048
    %v178 = vsel %vm177, %v170, 0
    %180 = vmatpush.msra.mxu0 %v54
    %181 = vmatpush.msra.mxu0 %v53
    %182 = vmatpush.msra.mxu0 %v52
    %183 = vmatpush.msra.mxu0 %v51
    %184 = vmatpush.msra.mxu0 %v50
    %185 = vmatpush.msra.mxu0 %v49
    %186 = vmatpush.msra.mxu0 %v48
    %187 = vmatpush.msra.mxu0 %v47
    %188 = vmatpush.msra.mxu0 %v46
    %189 = vmatpush.msra.mxu0 %v45
    %190 = vmatpush.msra.mxu0 %v44
    %191 = vmatpush.msra.mxu0 %v43
    %192 = vmatpush.msra.mxu0 %v42
    %193 = vmatpush.msra.mxu0 %v41
    %194 = vmatpush.msra.mxu0 %v40
    %195 = vmatpush.msra.mxu0 %v39
    %196 = vmatmul.f32.gmra.mxu0 %v164
    %v197 = vpop.f32.mrf.mxu0
    %v198 = vadd.f32 %v139, %v197
    %199 = vdwg.mxu0
    %200 = vmatpush.msra.mxu0 %v70
    %201 = vmatpush.msra.mxu0 %v69
    %202 = vmatpush.msra.mxu0 %v68
    %203 = vmatpush.msra.mxu0 %v67
    %204 = vmatpush.msra.mxu0 %v66
    %205 = vmatpush.msra.mxu0 %v65
    %206 = vmatpush.msra.mxu0 %v64
    %207 = vmatpush.msra.mxu0 %v63
    %208 = vmatpush.msra.mxu0 %v62
    %209 = vmatpush.msra.mxu0 %v61
    %210 = vmatpush.msra.mxu0 %v60
    %211 = vmatpush.msra.mxu0 %v59
    %212 = vmatpush.msra.mxu0 %v58
    %213 = vmatpush.msra.mxu0 %v57
    %214 = vmatpush.msra.mxu0 %v56
    %215 = vmatpush.msra.mxu0 %v55
    %216 = vmatmul.f32.gmra.mxu0 %v165
    %v217 = vpop.f32.mrf.mxu0
    %v218 = vadd.f32 %v198, %v217
    %219 = vdwg.mxu0
    %220 = vmatpush.msra.mxu0 %v86
    %221 = vmatpush.msra.mxu0 %v85
    %222 = vmatpush.msra.mxu0 %v84
    %223 = vmatpush.msra.mxu0 %v83
    %224 = vmatpush.msra.mxu0 %v82
    %225 = vmatpush.msra.mxu0 %v81
    %226 = vmatpush.msra.mxu0 %v80
    %227 = vmatpush.msra.mxu0 %v79
    %228 = vmatpush.msra.mxu0 %v78
    %229 = vmatpush.msra.mxu0 %v77
    %230 = vmatpush.msra.mxu0 %v76
    %231 = vmatpush.msra.mxu0 %v75
    %232 = vmatpush.msra.mxu0 %v74
    %233 = vmatpush.msra.mxu0 %v73
    %234 = vmatpush.msra.mxu0 %v72
    %235 = vmatpush.msra.mxu0 %v71
    %236 = vmatmul.f32.gmra.mxu0 %v166
    %v237 = vpop.f32.mrf.mxu0
    %v238 = vadd.f32 %v218, %v237
    %239 = vdwg.mxu0
    %240 = vmatpush.msra.mxu0 %v102
    %241 = vmatpush.msra.mxu0 %v101
    %242 = vmatpush.msra.mxu0 %v100
    %243 = vmatpush.msra.mxu0 %v99
    %244 = vmatpush.msra.mxu0 %v98
    %245 = vmatpush.msra.mxu0 %v97
    %246 = vmatpush.msra.mxu0 %v96
    %247 = vmatpush.msra.mxu0 %v95
    %248 = vmatpush.msra.mxu0 %v94
    %249 = vmatpush.msra.mxu0 %v93
    %250 = vmatpush.msra.mxu0 %v92
    %251 = vmatpush.msra.mxu0 %v91
    %252 = vmatpush.msra.mxu0 %v90
    %253 = vmatpush.msra.mxu0 %v89
    %254 = vmatpush.msra.mxu0 %v88
    %255 = vmatpush.msra.mxu0 %v87
    %256 = vmatmul.f32.gmra.mxu0 %v167
    %v257 = vpop.f32.mrf.mxu0
    %v258 = vadd.f32 %v238, %v257
    %259 = vdwg.mxu0
    %260 = vmatpush.msra.mxu0 %v118
    %261 = vmatpush.msra.mxu0 %v117
    %262 = vmatpush.msra.mxu0 %v116
    %263 = vmatpush.msra.mxu0 %v115
    %264 = vmatpush.msra.mxu0 %v114
    %265 = vmatpush.msra.mxu0 %v113
    %266 = vmatpush.msra.mxu0 %v112
    %267 = vmatpush.msra.mxu0 %v111
    %268 = vmatpush.msra.mxu0 %v110
    %269 = vmatpush.msra.mxu0 %v109
    %270 = vmatpush.msra.mxu0 %v108
    %271 = vmatpush.msra.mxu0 %v107
    %272 = vmatpush.msra.mxu0 %v106
    %273 = vmatpush.msra.mxu0 %v105
    %274 = vmatpush.msra.mxu0 %v104
    %275 = vmatpush.msra.mxu0 %v103
    %276 = vmatmul.f32.gmra.mxu0 %v168
    %v277 = vpop.f32.mrf.mxu0
    %v278 = vadd.f32 %v258, %v277
    %279 = vdwg.mxu0
    %280 = vmatpush.msra.mxu0 %v134
    %281 = vmatpush.msra.mxu0 %v133
    %282 = vmatpush.msra.mxu0 %v132
    %283 = vmatpush.msra.mxu0 %v131
    %284 = vmatpush.msra.mxu0 %v130
    %285 = vmatpush.msra.mxu0 %v129
    %286 = vmatpush.msra.mxu0 %v128
    %287 = vmatpush.msra.mxu0 %v127
    %288 = vmatpush.msra.mxu0 %v126
    %289 = vmatpush.msra.mxu0 %v125
    %290 = vmatpush.msra.mxu0 %v124
    %291 = vmatpush.msra.mxu0 %v123
    %292 = vmatpush.msra.mxu0 %v122
    %293 = vmatpush.msra.mxu0 %v121
    %294 = vmatpush.msra.mxu0 %v120
    %295 = vmatpush.msra.mxu0 %v119
    %296 = vmatmul.f32.gmra.mxu0 %v169
    %v297 = vpop.f32.mrf.mxu0
    %v298 = vadd.f32 %v278, %v297
    %299 = vdwg.mxu0
    %300 = vmatpush.msra.mxu0 0.0
    %301 = vmatpush.msra.mxu0 0.0
    %302 = vmatpush.msra.mxu0 0.0
    %303 = vmatpush.msra.mxu0 0.0
    %304 = vmatpush.msra.mxu0 0.0
    %305 = vmatpush.msra.mxu0 0.0
    %306 = vmatpush.msra.mxu0 0.0
    %307 = vmatpush.msra.mxu0 0.0
    %308 = vmatpush.msra.mxu0 0.0
    %309 = vmatpush.msra.mxu0 0.0
    %310 = vmatpush.msra.mxu0 0.0
    %311 = vmatpush.msra.mxu0 0.0
    %312 = vmatpush.msra.mxu0 0.0
    %313 = vmatpush.msra.mxu0 0.0
    %314 = vmatpush.msra.mxu0 %v136
    %315 = vmatpush.msra.mxu0 %v135
    %316 = vmatmul.f32.gmra.mxu0 %v178
    %v317 = vpop.f32.mrf.mxu0
    %v318 = vadd.f32 %v298, %v317
    %319 = vdwg.mxu0
    %vm320 = vcmask 80896
    %321 = vst.msk [vmem:[#allocation5] sm:$0xff] %vm320, %v318
    // Predicated region
    $region18: #{linear_net_forward.1} parent=1 // pred_check
      _
    $region19: #{linear_net_forward.1} parent=1 // pred_check_branch
      %323 = sbr.rel (0) target = $region21
    $region20: #{linear_net_forward.1} parent=1 // pred_region
      %325 = vsyncadd [#allocation4], 96
      %s326 = sshll.u32 [#allocation5], 4
      %s327 = int_to_ptr.vmem [resolvable:$true] %s326
      %s328 = sshll.u32 %s3, 4
      %s329 = int_to_ptr.hbm [resolvable:$true] %s328
      %334 = dma.vmem_to_hbm [thread:$0]  %s327, 32, %s329, [#allocation4], 32, 32, 2
    $region21: #{linear_net_forward.1} parent=1 // pred_fallthru
      _
    // Predicated region
    $region22: #{linear_net_forward.1} parent=1 // pred_check
      _
    $region23: #{linear_net_forward.1} parent=1 // pred_check_branch
      %336 = sbr.rel (0) target = $region25
    $region24: #{linear_net_forward.1} parent=1 // pred_region
      %338 = dma.done [#allocation4], 128
    $region25: #{linear_net_forward.1} parent=1 // pred_fallthru
      _
    %339 = vsyncpa [#allocation3], 1
    %340 = vsyncpa [#allocation4], 1

</llo_original>
